<compile_context>
chip_gen: v7x
topology: tpu7x:2x2x1
jax: 0.10.0
libtpu: 0.0.40
codegen_flags: <defaults>
</compile_context>

<pallas_src>
import jax
import jax.numpy as jnp
import numpy as np
from jax.experimental import pallas as pl
from jax.experimental.pallas import tpu as pltpu

EPS = 1e-5          # nn.BatchNorm2d default eps
LANE = 128
VMEM_LIMIT = 64 * 1024 * 1024   # <= physical VMEM on v5e/v6e (128 MiB) and v7x (64 MiB)


def _round_up(x, m):
    return (x + m - 1) // m * m


def _pick_bn_tile(mp, tm, target=1024):
    """Largest multiple of tm that divides mp and is <= target (elementwise pass tile)."""
    mt = mp // tm
    best = tm
    for d in range(1, mt + 1):
        if mt % d == 0 and tm * d <= target:
            best = tm * d
    return best


# ------------------------------------------------------------------ pass 1: GEMM + BN stats
def _gemm_stats_kernel(a_ref, w_ref, y_ref, sum_ref, sq_ref):
    # bf16 x bf16 -> f32 accumulate on the MXU.
    acc = jnp.dot(a_ref[...], w_ref[...], preferred_element_type=jnp.float32)
    # Intermediate is written back in bf16 (halves pass1-write / pass2-read HBM traffic);
    # the BN statistics below come from the in-register f32 accumulator.
    y_ref[...] = acc.astype(y_ref.dtype)
    # Per-tile partial sums (one (1, Np) row per grid step -> fully parallel M axis).
    sum_ref[...] = jnp.sum(acc, axis=0, keepdims=True)[None]
    sq_ref[...] = jnp.sum(acc * acc, axis=0, keepdims=True)[None]


def _gemm_stats(a_p, w_p, tm):
    Mp, Kp = a_p.shape
    Np = w_p.shape[1]
    mt = Mp // tm
    y, psum, psq = pl.pallas_call(
        _gemm_stats_kernel,
        out_shape=(
            jax.ShapeDtypeStruct((Mp, Np), jnp.bfloat16),    # raw conv output (bf16)
            jax.ShapeDtypeStruct((mt, 1, Np), jnp.float32),  # per-tile channel sum
            jax.ShapeDtypeStruct((mt, 1, Np), jnp.float32),  # per-tile channel sum of squares
        ),
        grid=(mt,),
        in_specs=[
            pl.BlockSpec((tm, Kp), lambda i: (i, 0)),
            pl.BlockSpec((Kp, Np), lambda i: (0, 0)),        # grid-invariant weight block
        ],
        out_specs=(
            pl.BlockSpec((tm, Np), lambda i: (i, 0)),
            pl.BlockSpec((1, 1, Np), lambda i: (i, 0, 0)),
            pl.BlockSpec((1, 1, Np), lambda i: (i, 0, 0)),
        ),
        compiler_params=pltpu.CompilerParams(
            dimension_semantics=("parallel",),               # both TCs on v7x
            vmem_limit_bytes=VMEM_LIMIT),
    )(a_p, w_p)
    # Tiny (mt, 1, Np) tree-reduce in f32 (better numerics than a single running sum).
    csum = jnp.sum(psum, axis=0)   # (1, Np)
    csq = jnp.sum(psq, axis=0)     # (1, Np)
    return y, csum, csq


# ------------------------------------------- pass 2: BN scale/shift (+residual) + masked ReLU
def _bn_kernel_res(y_ref, sc_ref, sh_ref, m_ref, r_ref, o_ref):
    y = y_ref[...].astype(jnp.float32) * sc_ref[...] + sh_ref[...] \
        + r_ref[...].astype(jnp.float32)
    y = jnp.where(m_ref[...] != 0.0, jnp.maximum(y, 0.0), y)
    o_ref[...] = y.astype(o_ref.dtype)


def _bn_kernel_nores(y_ref, sc_ref, sh_ref, m_ref, o_ref):
    y = y_ref[...].astype(jnp.float32) * sc_ref[...] + sh_ref[...]
    y = jnp.where(m_ref[...] != 0.0, jnp.maximum(y, 0.0), y)
    o_ref[...] = y.astype(o_ref.dtype)


def _bn_apply(y_raw, scale, shift, relu_mask, residual, out_dtype, tm_bn):
    Mp, Np = y_raw.shape
    mt = Mp // tm_bn
    args = [y_raw, scale, shift, relu_mask]
    in_specs = [
        pl.BlockSpec((tm_bn, Np), lambda i: (i, 0)),
        pl.BlockSpec((1, Np), lambda i: (0, 0)),
        pl.BlockSpec((1, Np), lambda i: (0, 0)),
        pl.BlockSpec((1, Np), lambda i: (0, 0)),
    ]
    if residual is not None:
        args.append(residual)
        in_specs.append(pl.BlockSpec((tm_bn, Np), lambda i: (i, 0)))
    kernel = _bn_kernel_res if residual is not None else _bn_kernel_nores
    return pl.pallas_call(
        kernel,
        out_shape=jax.ShapeDtypeStruct((Mp, Np), out_dtype),
        grid=(mt,),
        in_specs=in_specs,
        out_specs=pl.BlockSpec((tm_bn, Np), lambda i: (i, 0)),
        compiler_params=pltpu.CompilerParams(
            dimension_semantics=("parallel",),
            vmem_limit_bytes=VMEM_LIMIT),
    )(*args)


# ------------------------------------------------------------------ BN fold (tiny (1,N) math)
def _fold_bn(csum, csq, m_true, gamma, beta):
    width = csum.shape[1]
    mean = csum / m_true
    var = jnp.maximum(csq / m_true - mean * mean, 0.0)
    g = jnp.pad(gamma.astype(jnp.float32), (0, width - gamma.shape[0]),
                constant_values=1.0).reshape(1, -1)
    b = jnp.pad(beta.astype(jnp.float32), (0, width - beta.shape[0])).reshape(1, -1)
    scale = g * jax.lax.rsqrt(var + EPS)
    shift = b - mean * scale
    return scale, shift


# ------------------------------------------------------------- conv (im2col GEMM) + BN + relu
def conv_bn_gemm(a_bf16, w_padded_bf16, groups, relu_mask, residual=None,
                 out_dtype=jnp.bfloat16, tm=256, tm_bn_target=1024):
    """a_bf16: (M, K) im2col patches (bf16).  w_padded_bf16: (Kp, Ntot) already zero-padded.
       groups: [(col_start, padded_width, gamma, beta)] -- one BN per output column group."""
    M, K = a_bf16.shape
    Kp, Ntot = w_padded_bf16.shape
    tm = min(tm, _round_up(M, 8))
    Mp = _round_up(M, tm)

    # Padded M rows contribute zero to the channel sums (stats divide by the true M);
    # padded K columns hit zero weight rows, so the GEMM is unchanged.
    a_p = jnp.pad(a_bf16, ((0, Mp - M), (0, Kp - K)))

    y_raw, csum, csq = _gemm_stats(a_p, w_padded_bf16, tm)

    segs_scale, segs_shift = [], []
    for (c0, width, gamma, beta) in groups:
        s, sh = _fold_bn(csum[:, c0:c0 + width], csq[:, c0:c0 + width], M, gamma, beta)
        segs_scale.append(s)
        segs_shift.append(sh)
    scale = jnp.concatenate(segs_scale, axis=1)
    shift = jnp.concatenate(segs_shift, axis=1)

    res_p = None
    if residual is not None:
        res_p = jnp.pad(residual.astype(jnp.bfloat16),
                        ((0, Mp - residual.shape[0]), (0, Ntot - residual.shape[1])))

    tm_bn = _pick_bn_tile(Mp, tm, tm_bn_target)
    return _bn_apply(y_raw, scale, shift, relu_mask, res_p, out_dtype, tm_bn)


# ------------------------------------------------------------------------------- im2col glue
def _im2col(x_nhwc, ksize, stride, pad):
    """x: (B,H,W,C) bf16 -> patches (B*Ho*Wo, ksize*ksize*C) ordered (kh, kw, c), bf16."""
    B, H, W, C = x_nhwc.shape
    xp = jnp.pad(x_nhwc, ((0, 0), (pad, pad), (pad, pad), (0, 0)))
    Ho = (H + 2 * pad - ksize) // stride + 1
    Wo = (W + 2 * pad - ksize) // stride + 1
    cols = []
    for kh in range(ksize):
        for kw in range(ksize):
            cols.append(xp[:, kh:kh + stride * Ho:stride, kw:kw + stride * Wo:stride, :])
    patches = jnp.stack(cols, axis=3)  # (B, Ho, Wo, k*k, C)
    return patches.reshape(B * Ho * Wo, ksize * ksize * C), Ho, Wo


# ------------------------------------------------------------------------ ResBlock forward
def resblock_forward(x_nchw, params, stride, tm=256):
    """Pallas implementation of ResBlock.forward (training-mode BN).  NCHW in/out."""
    x = jnp.transpose(x_nchw, (0, 2, 3, 1)).astype(jnp.bfloat16)   # NHWC, bf16 before im2col
    B, H, W, Cin = x.shape
    Cout = params["w1"].shape[-1]
    has_proj = "ws" in params

    # ---- conv1 (3x3, stride, pad=1) (+ fused 1x1 projection shortcut) + BN + ReLU --------
    p1, Ho, Wo = _im2col(x, 3, stride, 1)               # (M, 9*Cin) bf16
    M = p1.shape[0]
    K1 = 9 * Cin
    Kp1 = _round_up(K1, LANE)
    Np1 = _round_up(Cout, LANE)

    if has_proj:
        # The 1x1 stride-s shortcut reads exactly x[i*s, j*s] == the center tap (kh=kw=1)
        # of conv1's pad=1 im2col patches, so its weights go into rows [4*Cin, 5*Cin) of
        # extra output columns.  One GEMM feeds both conv1 and the shortcut.
        Nps = _round_up(Cout, LANE)
        w_f = jnp.zeros((Kp1, Np1 + Nps), jnp.bfloat16)
        w_f = w_f.at[:K1, :Cout].set(params["w1"].reshape(K1, Cout).astype(jnp.bfloat16))
        w_f = w_f.at[4 * Cin:5 * Cin, Np1:Np1 + Cout].set(
            params["ws"].reshape(Cin, Cout).astype(jnp.bfloat16))
        groups = [(0, Np1, params["g1"], params["b1"]),
                  (Np1, Nps, params["gs"], params["bs"])]
        relu_mask = jnp.concatenate([jnp.ones((1, Np1), jnp.float32),
                                     jnp.zeros((1, Nps), jnp.float32)], axis=1)
    else:
        w_f = jnp.zeros((Kp1, Np1), jnp.bfloat16)
        w_f = w_f.at[:K1, :Cout].set(params["w1"].reshape(K1, Cout).astype(jnp.bfloat16))
        groups = [(0, Np1, params["g1"], params["b1"])]
        relu_mask = jnp.ones((1, Np1), jnp.float32)

    fused = conv_bn_gemm(p1, w_f, groups, relu_mask,
                         residual=None, out_dtype=jnp.bfloat16, tm=tm)

    y1 = fused[:M, :Cout].reshape(B, Ho, Wo, Cout)      # bf16 activation feeding conv2's MXU
    if has_proj:
        short = fused[:M, Np1:Np1 + Cout]               # bn_s(1x1 conv) output, bf16, no relu
    else:
        short = x.reshape(M, Cin)                       # identity (stride==1, Cin==Cout), bf16

    # ---- conv2 (3x3, stride 1, pad=1) + BN + residual add + ReLU --------------------------
    p2, _, _ = _im2col(y1, 3, 1, 1)                     # (M, 9*Cout) bf16
    K2 = 9 * Cout
    Kp2 = _round_up(K2, LANE)
    Np2 = _round_up(Cout, LANE)
    w2 = jnp.zeros((Kp2, Np2), jnp.bfloat16)
    w2 = w2.at[:K2, :Cout].set(params["w2"].reshape(K2, Cout).astype(jnp.bfloat16))

    out = conv_bn_gemm(p2, w2, [(0, Np2, params["g2"], params["b2"])],
                       jnp.ones((1, Np2), jnp.float32),
                       residual=short, out_dtype=jnp.float32, tm=tm)

    out = out[:M, :Cout].reshape(B, Ho, Wo, Cout)
    return jnp.transpose(out, (0, 3, 1, 2))             # back to NCHW


# -------------------------------------------------------------------------------- reference
def resblock_reference(x_nchw, params, stride):
    """Pure-JAX reference with the kernel's precision policy (bf16 MXU inputs, f32
    accumulation, f32 BN stats, bf16-rounded applied conv output / activation / residual)."""
    x = jnp.transpose(x_nchw, (0, 2, 3, 1)).astype(jnp.bfloat16)

    def conv(x, w, s, pad):
        return jax.lax.conv_general_dilated(
            x.astype(jnp.bfloat16), w.astype(jnp.bfloat16), (s, s),
            [(pad, pad), (pad, pad)],
            dimension_numbers=("NHWC", "HWIO", "NHWC"),
            preferred_element_type=jnp.float32)

    def bn(y_f32, g, b):
        mean = jnp.mean(y_f32, axis=(0, 1, 2), keepdims=True)
        var = jnp.mean((y_f32 - mean) ** 2, axis=(0, 1, 2), keepdims=True)
        scale = g.reshape(1, 1, 1, -1) * jax.lax.rsqrt(var + EPS)
        shift = b.reshape(1, 1, 1, -1) - mean * scale
        # stats from f32, applied value sees the bf16 intermediate rounding (like the kernel)
        y_b = y_f32.astype(jnp.bfloat16).astype(jnp.float32)
        return y_b * scale + shift

    y1 = jax.nn.relu(bn(conv(x, params["w1"], stride, 1),
                        params["g1"], params["b1"])).astype(jnp.bfloat16)
    out = bn(conv(y1, params["w2"], 1, 1), params["g2"], params["b2"])
    if "ws" in params:
        sc = bn(conv(x, params["ws"], stride, 0), params["gs"], params["bs"])
    else:
        sc = x.astype(jnp.float32)
    sc = sc.astype(jnp.bfloat16).astype(jnp.float32)    # residual stream kept in bf16
    return jnp.transpose(jax.nn.relu(out + sc), (0, 3, 1, 2))


# ----------------------------------------------------------------------------------- params
def init_params(key, cin, cout, stride):
    # Weights stored HWIO (== torch OIHW transposed by (2,3,1,0)); bn gamma/beta random so
    # the affine part is exercised.
    ks = jax.random.split(key, 8)
    params = {
        "w1": 0.2 * jax.random.normal(ks[0], (3, 3, cin, cout), jnp.float32),
        "g1": 1.0 + 0.1 * jax.random.normal(ks[1], (cout,), jnp.float32),
        "b1": 0.1 * jax.random.normal(ks[2], (cout,), jnp.float32),
        "w2": 0.2 * jax.random.normal(ks[3], (3, 3, cout, cout), jnp.float32),
        "g2": 1.0 + 0.1 * jax.random.normal(ks[4], (cout,), jnp.float32),
        "b2": 0.1 * jax.random.normal(ks[5], (cout,), jnp.float32),
    }
    if stride != 1 or cin != cout:
        params["ws"] = 0.2 * jax.random.normal(ks[6], (1, 1, cin, cout), jnp.float32)
        params["gs"] = jnp.ones((cout,), jnp.float32)
        params["bs"] = jnp.zeros((cout,), jnp.float32)
    return params


# ------------------------------------------------------------------------------------- main
if __name__ == "__main__":
    key = jax.random.PRNGKey(0)
    k_x1, k_p1, k_x2, k_p2 = jax.random.split(key, 4)

    # Case A: identity shortcut (in == out, stride == 1); M = 512 rows -> 2 GEMM M-tiles,
    # exercising the per-tile partial-sum BN path.
    x_a = jax.random.normal(k_x1, (2, 8, 16, 16), jnp.float32)     # NCHW
    p_a = init_params(k_p1, 8, 8, stride=1)
    out_a = jax.block_until_ready(resblock_forward(x_a, p_a, stride=1))
    ref_a = resblock_reference(x_a, p_a, stride=1)
    np.testing.assert_allclose(np.asarray(out_a), np.asarray(ref_a), rtol=1e-2, atol=1e-2)
    assert out_a.shape == (2, 8, 16, 16)

    # Case B: projection shortcut (1x1 conv stride 2 + BN), channels 4 -> 8,
    # exercising the shortcut fused into conv1's GEMM (two BN column groups + relu mask).
    x_b = jax.random.normal(k_x2, (2, 4, 16, 16), jnp.float32)     # NCHW
    p_b = init_params(k_p2, 4, 8, stride=2)
    out_b = jax.block_until_ready(resblock_forward(x_b, p_b, stride=2))
    ref_b = resblock_reference(x_b, p_b, stride=2)
    np.testing.assert_allclose(np.asarray(out_b), np.asarray(ref_b), rtol=1e-2, atol=1e-2)
    assert out_b.shape == (2, 8, 8, 8)

    print("KERNEL_OK")
</pallas_src>

<mosaic_0001>
module attributes {stable_mosaic.version = 11 : i64} {
  func.func @_gemm_stats_kernel(%arg0: i32, %arg1: memref<256x128xbf16, #tpu.memory_space<vmem>>, %arg2: memref<128x128xbf16, #tpu.memory_space<vmem>>, %arg3: memref<256x128xbf16, #tpu.memory_space<vmem>>, %arg4: memref<1x1x128xf32, #tpu.memory_space<vmem>>, %arg5: memref<1x1x128xf32, #tpu.memory_space<vmem>>) attributes {dimension_semantics = [#tpu.dimension_semantics<parallel>], iteration_bounds = array<i64: 2>, scalar_prefetch = 0 : i64, scratch_operands = 0 : i64, tpu.core_type = #tpu.core_type<tc>, window_params = [{transform_indices = @transform_0, window_bounds = array<i64: 256, 128>}, {pipeline_mode = #tpu.pipeline_mode<synchronous>, transform_indices = @transform_1, window_bounds = array<i64: 128, 128>}, {transform_indices = @transform_2, window_bounds = array<i64: 256, 128>}, {transform_indices = @transform_3, window_bounds = array<i64: 1, 1, 128>}, {transform_indices = @transform_4, window_bounds = array<i64: 1, 1, 128>}]} {
    %c0 = arith.constant 0 : index
    %c0_0 = arith.constant 0 : index
    %0 = vector.load %arg1[%c0, %c0_0] : memref<256x128xbf16, #tpu.memory_space<vmem>>, vector<256x128xbf16>
    %c0_1 = arith.constant 0 : index
    %c0_2 = arith.constant 0 : index
    %1 = vector.load %arg2[%c0_1, %c0_2] : memref<128x128xbf16, #tpu.memory_space<vmem>>, vector<128x128xbf16>
    %cst = arith.constant dense<0.000000e+00> : vector<256x128xf32>
    %2 = tpu.matmul %0, %1, %cst {dimension_numbers = #tpu.dot_dimension_numbers<[1], [0], [0], [1], [0, 0, 1, 1], [], []>} : vector<256x128xbf16>, vector<128x128xbf16>, vector<256x128xf32> -> vector<256x128xf32>
    %3 = arith.truncf %2 : vector<256x128xf32> to vector<256x128xbf16>
    %c0_3 = arith.constant 0 : index
    %c0_4 = arith.constant 0 : index
    %4 = vector.load %arg3[%c0_3, %c0_4] : memref<256x128xbf16, #tpu.memory_space<vmem>>, vector<256x128xbf16>
    tpu.vector_store %arg3[%c0_3, %c0_4], %3 {strides = array<i32>} : memref<256x128xbf16, #tpu.memory_space<vmem>>, vector<256x128xbf16>,
    %cst_5 = arith.constant dense<0.000000e+00> : vector<128xf32>
    %5 = vector.multi_reduction <add>, %2, %cst_5 [0] : vector<256x128xf32> to vector<128xf32>
    %6 = vector.shape_cast %5 : vector<128xf32> to vector<1x128xf32>
    %7 = vector.shape_cast %6 : vector<1x128xf32> to vector<1x1x128xf32>
    %c0_6 = arith.constant 0 : index
    %c0_7 = arith.constant 0 : index
    %c0_8 = arith.constant 0 : index
    %8 = vector.load %arg4[%c0_6, %c0_7, %c0_8] : memref<1x1x128xf32, #tpu.memory_space<vmem>>, vector<1x1x128xf32>
    tpu.vector_store %arg4[%c0_6, %c0_7, %c0_8], %7 {strides = array<i32>} : memref<1x1x128xf32, #tpu.memory_space<vmem>>, vector<1x1x128xf32>,
    %9 = arith.mulf %2, %2 : vector<256x128xf32>
    %cst_9 = arith.constant dense<0.000000e+00> : vector<128xf32>
    %10 = vector.multi_reduction <add>, %9, %cst_9 [0] : vector<256x128xf32> to vector<128xf32>
    %11 = vector.shape_cast %10 : vector<128xf32> to vector<1x128xf32>
    %12 = vector.shape_cast %11 : vector<1x128xf32> to vector<1x1x128xf32>
    %c0_10 = arith.constant 0 : index
    %c0_11 = arith.constant 0 : index
    %c0_12 = arith.constant 0 : index
    %13 = vector.load %arg5[%c0_10, %c0_11, %c0_12] : memref<1x1x128xf32, #tpu.memory_space<vmem>>, vector<1x1x128xf32>
    tpu.vector_store %arg5[%c0_10, %c0_11, %c0_12], %12 {strides = array<i32>} : memref<1x1x128xf32, #tpu.memory_space<vmem>>, vector<1x1x128xf32>,
    return
  }
  func.func @transform_0(%arg0: i32) -> (i32, i32) {
    %c0_i32 = arith.constant 0 : i32
    %c0_i32_0 = arith.constant 0 : i32
    return %arg0, %c0_i32 : i32, i32
  }
  func.func @transform_1(%arg0: i32) -> (i32, i32) {
    %c0_i32 = arith.constant 0 : i32
    %c0_i32_0 = arith.constant 0 : i32
    %c0_i32_1 = arith.constant 0 : i32
    return %c0_i32, %c0_i32_0 : i32, i32
  }
  func.func @transform_2(%arg0: i32) -> (i32, i32) {
    %c0_i32 = arith.constant 0 : i32
    %c0_i32_0 = arith.constant 0 : i32
    return %arg0, %c0_i32 : i32, i32
  }
  func.func @transform_3(%arg0: i32) -> (i32, i32, i32) {
    %c0_i32 = arith.constant 0 : i32
    %c0_i32_0 = arith.constant 0 : i32
    %c0_i32_1 = arith.constant 0 : i32
    return %arg0, %c0_i32, %c0_i32_0 : i32, i32, i32
  }
  func.func @transform_4(%arg0: i32) -> (i32, i32, i32) {
    %c0_i32 = arith.constant 0 : i32
    %c0_i32_0 = arith.constant 0 : i32
    %c0_i32_1 = arith.constant 0 : i32
    return %arg0, %c0_i32, %c0_i32_0 : i32, i32, i32
  }
}

</mosaic_0001>

<llo_original>
// kernel: tpu_custom_call.1
$region0: #{tpu_custom_call.1}
  #allocation0 [shape = 'u32[]', space=smem, size = 0x4, offset = 0x4, fixed_abs, tag = 'smem constant byte address 0x4 - core index']
  #allocation1 [shape = 'u32[144,128]{1,0:T(1,128)}', space=vmem, size = 0x12000, scoped, tag = 'internal scratch']
  %s0 = inlined_call_operand.hbm [shape: bf16[512,128], index: 0, kind: input, shape index: {}]
  %s1 = inlined_call_operand.hbm [shape: bf16[128,128], index: 1, kind: input, shape index: {}]
  %s2 = inlined_call_operand.hbm [shape: bf16[512,128], index: 2, kind: output, shape index: {0}]
  %s3 = inlined_call_operand.hbm [shape: f32[2,1,128], index: 3, kind: output, shape index: {1}]
  %s4 = inlined_call_operand.hbm [shape: f32[2,1,128], index: 4, kind: output, shape index: {2}]
  %5 = xla_tuple %s2, %s3, %s4
  %s6 = sld [smem:[#allocation0]]
  $region65: #{tpu_custom_call.1} parent=0
    _
  %s8 = ssub.s32 1, %s6
  %s9 = scalar_select 0, %s8, %s6
  $region1: #{tpu_custom_call.1} parent=0
    #allocation2 [shape = 'u8[131072]{0}', space=vmem, size = 0x20000, scoped, tag = 'input window, operand 0']
    #allocation3 [shape = 's32[2]{0}', space=sflag, size = 0x8, scoped, tag = 'scoped memory for tpu_custom_call.1']
    #allocation4 [shape = 's32[2]{0}', space=sflag, size = 0x8, scoped, tag = 'scoped memory for tpu_custom_call.1']
    #allocation5 [shape = 'u8[32768]{0}', space=vmem, size = 0x8000, scoped, tag = 'input window, operand 1, single buffered']
    #allocation6 [shape = 's32[1]{0}', space=sflag, size = 0x4, scoped, tag = 'scoped memory for tpu_custom_call.1']
    #allocation7 [shape = 'u8[131072]{0}', space=vmem, size = 0x20000, scoped, tag = 'output window, operand 0']
    #allocation8 [shape = 'u8[1024]{0}', space=vmem, size = 0x400, scoped, tag = 'output window, operand 1']
    #allocation9 [shape = 's32[2]{0}', space=sflag, size = 0x8, scoped, tag = 'scoped memory for tpu_custom_call.1']
    #allocation10 [shape = 'u8[1024]{0}', space=vmem, size = 0x400, scoped, tag = 'output window, operand 2']
    %10 = vsyncpa [#allocation3], 0
    %s11 = scalar_lea.sflag [#allocation3], 1
    %12 = vsyncpa %s11, 0
    %13 = vsyncpa [#allocation6], 0
    %14 = vsyncpa [#allocation4], 0
    %s15 = scalar_lea.sflag [#allocation4], 1
    %16 = vsyncpa %s15, 0
    %17 = vsyncpa [#allocation9], 0
    %s18 = scalar_lea.sflag [#allocation9], 1
    %19 = vsyncpa %s18, 0
    loop: start=0, step=1, limit=4
    $region2: #{tpu_custom_call.1} parent=1 // loop_pre_header
      _
    $region3: #{tpu_custom_call.1} parent=1 // loop_header
      %s21 = sphi 0, %s25
      %p22 = scmp.ge.s32.totalorder %s21, 4
      %s31 = sphi 0, %s33
      %s34 = sphi 0, %s31
      %s35 = sphi 0, %s34
      %s51 = sphi 0, %s35
      %s55 = sphi 0, %s55
      %s57 = sphi 0, %s55
      %s58 = sphi 0, %s57
      %s72 = sphi 0, %s58
      %s78 = sphi 0, %s80
      %s81 = sphi 0, %s78
      %s82 = sphi 0, %s81
      %s98 = sphi 0, %s82
      %s104 = sphi 0, %s106
      %s107 = sphi 0, %s104
      %s108 = sphi 0, %s107
      %s124 = sphi 0, %s108
      %s130 = sphi 0, %s132
      %s133 = sphi 0, %s130
      %s134 = sphi 0, %s133
      %s150 = sphi 0, %s134
    $region4: #{tpu_custom_call.1} parent=1 // loop_header_branch
      %24 = sbr.rel (%p22) target = $region8
    $region5: #{tpu_custom_call.1} parent=1 // loop_body
      %s26 = ssub.s32 %s21, 1
      %s27 = ssub.s32 %s21, 2
      %s28 = sadd.s32 %s21, 1
      %s29 = ssub.s32 %s21, %s28
      %p30 = scmp.eq.s32.totalorder %s29, 0
      %s32 = sadd.s32 %s31, 1
      %s33 = scalar_select %p30, %s31, %s32
      %p36 = pneg %p30
      %p37 = scmp.eq.s32.totalorder %s21, 1
      %p38 = por %p36, %p37
      %p39 = scmp.ne.s32.totalorder %s31, %s34
      %p40 = scmp.eq.s32.totalorder %s21, 0
      %p41 = por %p39, %p40
      %p42 = scmp.ne.s32.totalorder %s31, %s34
      %p43 = scmp.eq.s32.totalorder %s26, 1
      %p44 = por %p42, %p43
      %p45 = scmp.ne.s32.totalorder %s34, %s35
      %p46 = scmp.eq.s32.totalorder %s26, 0
      %p47 = por %p45, %p46
      %p48 = scmp.ne.s32.totalorder %s34, %s35
      %p49 = scmp.eq.s32.totalorder %s27, 1
      %p50 = por %p48, %p49
      %p52 = scmp.ne.s32.totalorder %s35, %s51
      %p53 = scmp.eq.s32.totalorder %s27, 0
      %p54 = por %p52, %p53
      %s56 = sadd.s32 %s55, 1
      %p59 = scmp.eq.s32.totalorder %s21, 1
      %p60 = scmp.ne.s32.totalorder %s55, %s57
      %p61 = scmp.eq.s32.totalorder %s21, 0
      %p62 = por %p60, %p61
      %p63 = scmp.ne.s32.totalorder %s55, %s57
      %p64 = scmp.eq.s32.totalorder %s26, 1
      %p65 = por %p63, %p64
      %p66 = scmp.ne.s32.totalorder %s57, %s58
      %p67 = scmp.eq.s32.totalorder %s26, 0
      %p68 = por %p66, %p67
      %p69 = scmp.ne.s32.totalorder %s57, %s58
      %p70 = scmp.eq.s32.totalorder %s27, 1
      %p71 = por %p69, %p70
      %p73 = scmp.ne.s32.totalorder %s58, %s72
      %p74 = scmp.eq.s32.totalorder %s27, 0
      %p75 = por %p73, %p74
      %s76 = ssub.s32 %s21, %s28
      %p77 = scmp.eq.s32.totalorder %s76, 0
      %s79 = sadd.s32 %s78, 1
      %s80 = scalar_select %p77, %s78, %s79
      %p83 = pneg %p77
      %p84 = scmp.eq.s32.totalorder %s21, 1
      %p85 = por %p83, %p84
      %p86 = scmp.ne.s32.totalorder %s78, %s81
      %p87 = scmp.eq.s32.totalorder %s21, 0
      %p88 = por %p86, %p87
      %p89 = scmp.ne.s32.totalorder %s78, %s81
      %p90 = scmp.eq.s32.totalorder %s26, 1
      %p91 = por %p89, %p90
      %p92 = scmp.ne.s32.totalorder %s81, %s82
      %p93 = scmp.eq.s32.totalorder %s26, 0
      %p94 = por %p92, %p93
      %p95 = scmp.ne.s32.totalorder %s81, %s82
      %p96 = scmp.eq.s32.totalorder %s27, 1
      %p97 = por %p95, %p96
      %p99 = scmp.ne.s32.totalorder %s82, %s98
      %p100 = scmp.eq.s32.totalorder %s27, 0
      %p101 = por %p99, %p100
      %s102 = ssub.s32 %s21, %s28
      %p103 = scmp.eq.s32.totalorder %s102, 0
      %s105 = sadd.s32 %s104, 1
      %s106 = scalar_select %p103, %s104, %s105
      %p109 = pneg %p103
      %p110 = scmp.eq.s32.totalorder %s21, 1
      %p111 = por %p109, %p110
      %p112 = scmp.ne.s32.totalorder %s104, %s107
      %p113 = scmp.eq.s32.totalorder %s21, 0
      %p114 = por %p112, %p113
      %p115 = scmp.ne.s32.totalorder %s104, %s107
      %p116 = scmp.eq.s32.totalorder %s26, 1
      %p117 = por %p115, %p116
      %p118 = scmp.ne.s32.totalorder %s107, %s108
      %p119 = scmp.eq.s32.totalorder %s26, 0
      %p120 = por %p118, %p119
      %p121 = scmp.ne.s32.totalorder %s107, %s108
      %p122 = scmp.eq.s32.totalorder %s27, 1
      %p123 = por %p121, %p122
      %p125 = scmp.ne.s32.totalorder %s108, %s124
      %p126 = scmp.eq.s32.totalorder %s27, 0
      %p127 = por %p125, %p126
      %s128 = ssub.s32 %s21, %s28
      %p129 = scmp.eq.s32.totalorder %s128, 0
      %s131 = sadd.s32 %s130, 1
      %s132 = scalar_select %p129, %s130, %s131
      %p135 = pneg %p129
      %p136 = scmp.eq.s32.totalorder %s21, 1
      %p137 = por %p135, %p136
      %p138 = scmp.ne.s32.totalorder %s130, %s133
      %p139 = scmp.eq.s32.totalorder %s21, 0
      %p140 = por %p138, %p139
      %p141 = scmp.ne.s32.totalorder %s130, %s133
      %p142 = scmp.eq.s32.totalorder %s26, 1
      %p143 = por %p141, %p142
      %p144 = scmp.ne.s32.totalorder %s133, %s134
      %p145 = scmp.eq.s32.totalorder %s26, 0
      %p146 = por %p144, %p145
      %p147 = scmp.ne.s32.totalorder %s133, %s134
      %p148 = scmp.eq.s32.totalorder %s27, 1
      %p149 = por %p147, %p148
      %p151 = scmp.ne.s32.totalorder %s134, %s150
      %p152 = scmp.eq.s32.totalorder %s27, 0
      %p153 = por %p151, %p152
      %p154 = scmp.le.s32.totalorder 1, %s21
      %p155 = scmp.lt.s32.totalorder %s21, 3
      %p156 = pnand %p154, %p155
      %p157 = pneg %p156
      // Predicated region
      $region9: #{tpu_custom_call.1} parent=5 // pred_check
        _
      $region10: #{tpu_custom_call.1} parent=5 // pred_check_branch
        %159 = sbr.rel (%p156) target = $region12
      $region11: #{tpu_custom_call.1} parent=5 // pred_region
        %s160 = ssub.s32 %s21, 1
        // Predicated region
        $region13: #{tpu_custom_call.1} parent=11 // pred_check
          %p161 = pneg %p68
        $region14: #{tpu_custom_call.1} parent=11 // pred_check_branch
          %163 = sbr.rel (%p161) target = $region16
        $region15: #{tpu_custom_call.1} parent=11 // pred_region
          %s165 = ssub.s32 1024, 1024
          %166 = vsyncadd [#allocation6], %s165
          %s167 = sshll.u32 [#allocation5], 4
          %s168 = int_to_ptr.vmem [resolvable:$true] %s167
          %173 = dma.hbm_to_vmem [thread:$0]  %s1, 1024, %s168, [#allocation6], 64, 64, 4
        $region16: #{tpu_custom_call.1} parent=11 // pred_fallthru
          _
      $region12: #{tpu_custom_call.1} parent=5 // pred_fallthru
        _
      %p174 = scmp.lt.s32.totalorder %s21, 2
      // Predicated region
      $region17: #{tpu_custom_call.1} parent=5 // pred_check
        %p175 = pneg %p174
      $region18: #{tpu_custom_call.1} parent=5 // pred_check_branch
        %177 = sbr.rel (%p175) target = $region20
      $region19: #{tpu_custom_call.1} parent=5 // pred_region
        // Predicated region
        $region21: #{tpu_custom_call.1} parent=19 // pred_check
          %p178 = pneg %p41
        $region22: #{tpu_custom_call.1} parent=19 // pred_check_branch
          %180 = sbr.rel (%p178) target = $region24
        $region23: #{tpu_custom_call.1} parent=19 // pred_region
          %s181 = sand.u32 %s31, 1
          %s182 = scalar_lea.sflag [#allocation3], %s181
          %s183 = sand.u32 %s31, 1
          %s184 = smul.addr %s183, 128
          %s185 = scalar_lea.vmem [#allocation2], %s184
          %s186 = smul.u32 32, %s21
          %s188 = ssub.s32 2048, 2048
          %189 = vsyncadd %s182, %s188
          %s190 = smul.addr %s186, 64
          %s191 = scalar_lea.hbm %s0, %s190
          %s192 = sshll.u32 %s185, 4
          %s193 = int_to_ptr.vmem [resolvable:$true] %s192
          %198 = dma.hbm_to_vmem [thread:$0]  %s191, 2048, %s193, %s182, 64, 64, 4
        $region24: #{tpu_custom_call.1} parent=19 // pred_fallthru
          _
      $region20: #{tpu_custom_call.1} parent=5 // pred_fallthru
        _
      %p199 = scmp.le.s32.totalorder 1, %s21
      %p200 = scmp.lt.s32.totalorder %s21, 3
      %p201 = pnand %p199, %p200
      %p202 = pneg %p201
      // Predicated region
      $region25: #{tpu_custom_call.1} parent=5 // pred_check
        _
      $region26: #{tpu_custom_call.1} parent=5 // pred_check_branch
        %204 = sbr.rel (%p201) target = $region28
      $region27: #{tpu_custom_call.1} parent=5 // pred_region
        %s205 = ssub.s32 %s21, 1
        %s206 = sand.u32 %s34, 1
        %s207 = scalar_lea.sflag [#allocation3], %s206
        %s208 = sand.u32 %s34, 1
        %s209 = smul.addr %s208, 128
        %s210 = scalar_lea.vmem [#allocation2], %s209
        // Predicated region
        $region29: #{tpu_custom_call.1} parent=27 // pred_check
          %p211 = pneg %p47
        $region30: #{tpu_custom_call.1} parent=27 // pred_check_branch
          %213 = sbr.rel (%p211) target = $region32
        $region31: #{tpu_custom_call.1} parent=27 // pred_region
          %214 = dma.done %s207, 2048
        $region32: #{tpu_custom_call.1} parent=27 // pred_fallthru
          _
        // Predicated region
        $region33: #{tpu_custom_call.1} parent=27 // pred_check
          %p215 = pneg %p68
        $region34: #{tpu_custom_call.1} parent=27 // pred_check_branch
          %217 = sbr.rel (%p215) target = $region36
        $region35: #{tpu_custom_call.1} parent=27 // pred_region
          %218 = dma.done [#allocation6], 1024
        $region36: #{tpu_custom_call.1} parent=27 // pred_fallthru
          _
        %s219 = sand.u32 %s34, 1
        %s220 = scalar_lea.sflag [#allocation3], %s219
        %s221 = sand.u32 %s34, 1
        %s222 = smul.addr %s221, 128
        %s223 = scalar_lea.vmem [#allocation2], %s222
        %p224 = pneg %p47
        %p225 = pneg %p44
        %p226 = pneg %p68
        %p227 = pneg %p65
        %p228 = pneg %p94
        %p229 = pneg %p91
        %s230 = sand.u32 %s81, 1
        %s231 = scalar_lea.sflag [#allocation4], %s230
        %s232 = sand.u32 %s81, 1
        %s233 = smul.addr %s232, 128
        %s234 = scalar_lea.vmem [#allocation7], %s233
        %p235 = pneg %p120
        %p236 = pneg %p117
        %s237 = sand.u32 %s26, 1
        %s238 = scalar_lea.sflag [#allocation9], %s237
        %s239 = sand.u32 %s107, 1
        %s240 = scalar_lea.vmem [#allocation8], %s239
        %p241 = pneg %p146
        %p242 = pneg %p143
        %s243 = sand.u32 %s26, 1
        %s244 = scalar_lea.sflag [#allocation9], %s243
        %s245 = sand.u32 %s133, 1
        %s246 = scalar_lea.vmem [#allocation10], %s245
        %s247 = smul.u32 32, %s26
        %s248 = smul.u32 32, %s26
        %v250 = vld [vmem:[%s210] sm:$0xf]
        %v251 = vld [vmem:[%s210 + $0x4] sm:$0xf]
        %v252 = vld [vmem:[%s210 + $0x8] sm:$0xf]
        %v253 = vld [vmem:[%s210 + $0xc] sm:$0xf]
        %v254 = vld [vmem:[%s210 + $0x10] sm:$0xf]
        %v255 = vld [vmem:[%s210 + $0x14] sm:$0xf]
        %v256 = vld [vmem:[%s210 + $0x18] sm:$0xf]
        %v257 = vld [vmem:[%s210 + $0x1c] sm:$0xf]
        %v258 = vld [vmem:[%s210 + $0x20] sm:$0xf]
        %v259 = vld [vmem:[%s210 + $0x24] sm:$0xf]
        %v260 = vld [vmem:[%s210 + $0x28] sm:$0xf]
        %v261 = vld [vmem:[%s210 + $0x2c] sm:$0xf]
        %v262 = vld [vmem:[%s210 + $0x30] sm:$0xf]
        %v263 = vld [vmem:[%s210 + $0x34] sm:$0xf]
        %v264 = vld [vmem:[%s210 + $0x38] sm:$0xf]
        %v265 = vld [vmem:[%s210 + $0x3c] sm:$0xf]
        %v266 = vld [vmem:[%s210 + $0x40] sm:$0xf]
        %v267 = vld [vmem:[%s210 + $0x44] sm:$0xf]
        %v268 = vld [vmem:[%s210 + $0x48] sm:$0xf]
        %v269 = vld [vmem:[%s210 + $0x4c] sm:$0xf]
        %v270 = vld [vmem:[%s210 + $0x50] sm:$0xf]
        %v271 = vld [vmem:[%s210 + $0x54] sm:$0xf]
        %v272 = vld [vmem:[%s210 + $0x58] sm:$0xf]
        %v273 = vld [vmem:[%s210 + $0x5c] sm:$0xf]
        %v274 = vld [vmem:[%s210 + $0x60] sm:$0xf]
        %v275 = vld [vmem:[%s210 + $0x64] sm:$0xf]
        %v276 = vld [vmem:[%s210 + $0x68] sm:$0xf]
        %v277 = vld [vmem:[%s210 + $0x6c] sm:$0xf]
        %v278 = vld [vmem:[%s210 + $0x70] sm:$0xf]
        %v279 = vld [vmem:[%s210 + $0x74] sm:$0xf]
        %v280 = vld [vmem:[%s210 + $0x78] sm:$0xf]
        %v281 = vld [vmem:[%s210 + $0x7c] sm:$0xf]
        %v282 = vld [vmem:[#allocation5] sm:$0xf]
        %v283 = vld [vmem:[#allocation5 + $0x4] sm:$0xf]
        %v284 = vld [vmem:[#allocation5 + $0x8] sm:$0xf]
        %v285 = vld [vmem:[#allocation5 + $0xc] sm:$0xf]
        %v286 = vld [vmem:[#allocation5 + $0x10] sm:$0xf]
        %v287 = vld [vmem:[#allocation5 + $0x14] sm:$0xf]
        %v288 = vld [vmem:[#allocation5 + $0x18] sm:$0xf]
        %v289 = vld [vmem:[#allocation5 + $0x1c] sm:$0xf]
        %v290 = vld [vmem:[#allocation5 + $0x20] sm:$0xf]
        %v291 = vld [vmem:[#allocation5 + $0x24] sm:$0xf]
        %v292 = vld [vmem:[#allocation5 + $0x28] sm:$0xf]
        %v293 = vld [vmem:[#allocation5 + $0x2c] sm:$0xf]
        %v294 = vld [vmem:[#allocation5 + $0x30] sm:$0xf]
        %v295 = vld [vmem:[#allocation5 + $0x34] sm:$0xf]
        %v296 = vld [vmem:[#allocation5 + $0x38] sm:$0xf]
        %v297 = vld [vmem:[#allocation5 + $0x3c] sm:$0xf]
        %v330 = vunpack.c.l.b16 %v250
        %v331 = vunpack.c.l.b16 %v251
        %v332 = vunpack.c.l.b16 %v252
        %v333 = vunpack.c.l.b16 %v253
        %v334 = vunpack.c.l.b16 %v254
        %v335 = vunpack.c.l.b16 %v255
        %v336 = vunpack.c.l.b16 %v256
        %v337 = vunpack.c.l.b16 %v257
        %v338 = vunpack.c.l.b16 %v258
        %v339 = vunpack.c.l.b16 %v259
        %v340 = vunpack.c.l.b16 %v260
        %v341 = vunpack.c.l.b16 %v261
        %v342 = vunpack.c.l.b16 %v262
        %v343 = vunpack.c.l.b16 %v263
        %v344 = vunpack.c.l.b16 %v264
        %v345 = vunpack.c.l.b16 %v265
        %v346 = vunpack.c.l.b16 %v266
        %v347 = vunpack.c.l.b16 %v267
        %v348 = vunpack.c.l.b16 %v268
        %v349 = vunpack.c.l.b16 %v269
        %v350 = vunpack.c.l.b16 %v270
        %v351 = vunpack.c.l.b16 %v271
        %v352 = vunpack.c.l.b16 %v272
        %v353 = vunpack.c.l.b16 %v273
        %v354 = vunpack.c.l.b16 %v274
        %v355 = vunpack.c.l.b16 %v275
        %v356 = vunpack.c.l.b16 %v276
        %v357 = vunpack.c.l.b16 %v277
        %v358 = vunpack.c.l.b16 %v278
        %v359 = vunpack.c.l.b16 %v279
        %v360 = vunpack.c.l.b16 %v280
        %v361 = vunpack.c.l.b16 %v281
        %v362 = vpack.c.b16 %v331, %v330
        %v363 = vpack.c.b16 %v333, %v332
        %v364 = vpack.c.b16 %v335, %v334
        %v365 = vpack.c.b16 %v337, %v336
        %v366 = vpack.c.b16 %v339, %v338
        %v367 = vpack.c.b16 %v341, %v340
        %v368 = vpack.c.b16 %v343, %v342
        %v369 = vpack.c.b16 %v345, %v344
        %v370 = vpack.c.b16 %v347, %v346
        %v371 = vpack.c.b16 %v349, %v348
        %v372 = vpack.c.b16 %v351, %v350
        %v373 = vpack.c.b16 %v353, %v352
        %v374 = vpack.c.b16 %v355, %v354
        %v375 = vpack.c.b16 %v357, %v356
        %v376 = vpack.c.b16 %v359, %v358
        %v377 = vpack.c.b16 %v361, %v360
        %v410 = vunpack.c.l.b16 %v282
        %v411 = vunpack.c.l.b16 %v283
        %v412 = vunpack.c.l.b16 %v284
        %v413 = vunpack.c.l.b16 %v285
        %v414 = vunpack.c.l.b16 %v286
        %v415 = vunpack.c.l.b16 %v287
        %v416 = vunpack.c.l.b16 %v288
        %v417 = vunpack.c.l.b16 %v289
        %v418 = vunpack.c.l.b16 %v290
        %v419 = vunpack.c.l.b16 %v291
        %v420 = vunpack.c.l.b16 %v292
        %v421 = vunpack.c.l.b16 %v293
        %v422 = vunpack.c.l.b16 %v294
        %v423 = vunpack.c.l.b16 %v295
        %v424 = vunpack.c.l.b16 %v296
        %v425 = vunpack.c.l.b16 %v297
        %v426 = vpack.c.b16 %v411, %v410
        %v427 = vpack.c.b16 %v413, %v412
        %v428 = vpack.c.b16 %v415, %v414
        %v429 = vpack.c.b16 %v417, %v416
        %v430 = vpack.c.b16 %v419, %v418
        %v431 = vpack.c.b16 %v421, %v420
        %v432 = vpack.c.b16 %v423, %v422
        %v433 = vpack.c.b16 %v425, %v424
        %442 = vmatprep.subr.bf16.mxu0 0
        %443 = vmatpush1.bf16.msra.mxu0 %v426
        %444 = vmatprep.subr.bf16.mxu0 0
        %445 = vmatpush1.bf16.msra.mxu0 %v427
        %446 = vmatprep.subr.bf16.mxu0 0
        %447 = vmatpush1.bf16.msra.mxu0 %v428
        %448 = vmatprep.subr.bf16.mxu0 0
        %449 = vmatpush1.bf16.msra.mxu0 %v429
        %450 = vmatprep.subr.bf16.mxu0 0
        %451 = vmatpush1.bf16.msra.mxu0 %v430
        %452 = vmatprep.subr.bf16.mxu0 0
        %453 = vmatpush1.bf16.msra.mxu0 %v431
        %454 = vmatprep.subr.bf16.mxu0 0
        %455 = vmatpush1.bf16.msra.mxu0 %v432
        %456 = vmatprep.subr.bf16.mxu0 0
        %457 = vmatpush1.bf16.msra.mxu0 %v433
        %458 = vmatprep.subr.bf16.mxu0 0
        %459 = vmatpush1.bf16.msra.mxu0 0
        %460 = vmatprep.subr.bf16.mxu0 0
        %461 = vmatpush1.bf16.msra.mxu0 0
        %462 = vmatprep.subr.bf16.mxu0 0
        %463 = vmatpush1.bf16.msra.mxu0 0
        %464 = vmatprep.subr.bf16.mxu0 0
        %465 = vmatpush1.bf16.msra.mxu0 0
        %466 = vmatprep.subr.bf16.mxu0 0
        %467 = vmatpush1.bf16.msra.mxu0 0
        %468 = vmatprep.subr.bf16.mxu0 0
        %469 = vmatpush1.bf16.msra.mxu0 0
        %470 = vmatprep.subr.bf16.mxu0 0
        %471 = vmatpush1.bf16.msra.mxu0 0
        %472 = vmatprep.subr.bf16.mxu0 0
        %473 = vmatpush1.bf16.msra.mxu0 0
        %474 = vmatprep.mubr.bf16.mxu0 0
        %475 = vmatmul.mubr.bf16.gmra.mrb[0].mxu0 %v362
        %v476 = vpop.f32.mrb[0].mxu0
        %v477 = vadd.f32 0.0, %v476
        %v478 = vpop.f32.mrb[0].mxu0
        %v479 = vpop.f32.mrb[0].mxu0
        %v480 = vadd.f32 0.0, %v479
        %v481 = vpop.f32.mrb[0].mxu0
        %482 = vmatprep.mubr.bf16.mxu0 0
        %483 = vmatmul.mubr.bf16.gmra.mrb[0].mxu0 %v363
        %v484 = vpop.f32.mrb[0].mxu0
        %v485 = vadd.f32 0.0, %v484
        %v486 = vpop.f32.mrb[0].mxu0
        %v487 = vpop.f32.mrb[0].mxu0
        %v488 = vadd.f32 0.0, %v487
        %v489 = vpop.f32.mrb[0].mxu0
        %490 = vmatprep.mubr.bf16.mxu0 0
        %491 = vmatmul.mubr.bf16.gmra.mrb[0].mxu0 %v364
        %v492 = vpop.f32.mrb[0].mxu0
        %v493 = vadd.f32 0.0, %v492
        %v494 = vpop.f32.mrb[0].mxu0
        %v495 = vpop.f32.mrb[0].mxu0
        %v496 = vadd.f32 0.0, %v495
        %v497 = vpop.f32.mrb[0].mxu0
        %498 = vmatprep.mubr.bf16.mxu0 0
        %499 = vmatmul.mubr.bf16.gmra.mrb[0].mxu0 %v365
        %v500 = vpop.f32.mrb[0].mxu0
        %v501 = vadd.f32 0.0, %v500
        %v502 = vpop.f32.mrb[0].mxu0
        %v503 = vpop.f32.mrb[0].mxu0
        %v504 = vadd.f32 0.0, %v503
        %v505 = vpop.f32.mrb[0].mxu0
        %506 = vmatprep.mubr.bf16.mxu0 0
        %507 = vmatmul.mubr.bf16.gmra.mrb[0].mxu0 %v366
        %v508 = vpop.f32.mrb[0].mxu0
        %v509 = vadd.f32 0.0, %v508
        %v510 = vpop.f32.mrb[0].mxu0
        %v511 = vpop.f32.mrb[0].mxu0
        %v512 = vadd.f32 0.0, %v511
        %v513 = vpop.f32.mrb[0].mxu0
        %514 = vmatprep.mubr.bf16.mxu0 0
        %515 = vmatmul.mubr.bf16.gmra.mrb[0].mxu0 %v367
        %v516 = vpop.f32.mrb[0].mxu0
        %v517 = vadd.f32 0.0, %v516
        %v518 = vpop.f32.mrb[0].mxu0
        %v519 = vpop.f32.mrb[0].mxu0
        %v520 = vadd.f32 0.0, %v519
        %v521 = vpop.f32.mrb[0].mxu0
        %522 = vmatprep.mubr.bf16.mxu0 0
        %523 = vmatmul.mubr.bf16.gmra.mrb[0].mxu0 %v368
        %v524 = vpop.f32.mrb[0].mxu0
        %v525 = vadd.f32 0.0, %v524
        %v526 = vpop.f32.mrb[0].mxu0
        %v527 = vpop.f32.mrb[0].mxu0
        %v528 = vadd.f32 0.0, %v527
        %v529 = vpop.f32.mrb[0].mxu0
        %530 = vmatprep.mubr.bf16.mxu0 0
        %531 = vmatmul.mubr.bf16.gmra.mrb[0].mxu0 %v369
        %v532 = vpop.f32.mrb[0].mxu0
        %v533 = vadd.f32 0.0, %v532
        %v534 = vpop.f32.mrb[0].mxu0
        %v535 = vpop.f32.mrb[0].mxu0
        %v536 = vadd.f32 0.0, %v535
        %v537 = vpop.f32.mrb[0].mxu0
        %538 = vmatprep.mubr.bf16.mxu0 0
        %539 = vmatmul.mubr.bf16.gmra.mrb[0].mxu0 %v370
        %v540 = vpop.f32.mrb[0].mxu0
        %v541 = vadd.f32 0.0, %v540
        %v542 = vpop.f32.mrb[0].mxu0
        %v543 = vpop.f32.mrb[0].mxu0
        %v544 = vadd.f32 0.0, %v543
        %v545 = vpop.f32.mrb[0].mxu0
        %546 = vmatprep.mubr.bf16.mxu0 0
        %547 = vmatmul.mubr.bf16.gmra.mrb[0].mxu0 %v371
        %v548 = vpop.f32.mrb[0].mxu0
        %v549 = vadd.f32 0.0, %v548
        %v550 = vpop.f32.mrb[0].mxu0
        %v551 = vpop.f32.mrb[0].mxu0
        %v552 = vadd.f32 0.0, %v551
        %v553 = vpop.f32.mrb[0].mxu0
        %554 = vmatprep.mubr.bf16.mxu0 0
        %555 = vmatmul.mubr.bf16.gmra.mrb[0].mxu0 %v372
        %v556 = vpop.f32.mrb[0].mxu0
        %v557 = vadd.f32 0.0, %v556
        %v558 = vpop.f32.mrb[0].mxu0
        %v559 = vpop.f32.mrb[0].mxu0
        %v560 = vadd.f32 0.0, %v559
        %v561 = vpop.f32.mrb[0].mxu0
        %562 = vmatprep.mubr.bf16.mxu0 0
        %563 = vmatmul.mubr.bf16.gmra.mrb[0].mxu0 %v373
        %v564 = vpop.f32.mrb[0].mxu0
        %v565 = vadd.f32 0.0, %v564
        %v566 = vpop.f32.mrb[0].mxu0
        %v567 = vpop.f32.mrb[0].mxu0
        %v568 = vadd.f32 0.0, %v567
        %v569 = vpop.f32.mrb[0].mxu0
        %570 = vmatprep.mubr.bf16.mxu0 0
        %571 = vmatmul.mubr.bf16.gmra.mrb[0].mxu0 %v374
        %v572 = vpop.f32.mrb[0].mxu0
        %v573 = vadd.f32 0.0, %v572
        %v574 = vpop.f32.mrb[0].mxu0
        %v575 = vpop.f32.mrb[0].mxu0
        %v576 = vadd.f32 0.0, %v575
        %v577 = vpop.f32.mrb[0].mxu0
        %578 = vmatprep.mubr.bf16.mxu0 0
        %579 = vmatmul.mubr.bf16.gmra.mrb[0].mxu0 %v375
        %v580 = vpop.f32.mrb[0].mxu0
        %v581 = vadd.f32 0.0, %v580
        %v582 = vpop.f32.mrb[0].mxu0
        %v583 = vpop.f32.mrb[0].mxu0
        %v584 = vadd.f32 0.0, %v583
        %v585 = vpop.f32.mrb[0].mxu0
        %586 = vmatprep.mubr.bf16.mxu0 0
        %587 = vmatmul.mubr.bf16.gmra.mrb[0].mxu0 %v376
        %v588 = vpop.f32.mrb[0].mxu0
        %v589 = vadd.f32 0.0, %v588
        %v590 = vpop.f32.mrb[0].mxu0
        %v591 = vpop.f32.mrb[0].mxu0
        %v592 = vadd.f32 0.0, %v591
        %v593 = vpop.f32.mrb[0].mxu0
        %594 = vmatprep.mubr.bf16.mxu0 0
        %595 = vmatmul.mubr.bf16.gmra.mrb[0].mxu0 %v377
        %v596 = vpop.f32.mrb[0].mxu0
        %v597 = vadd.f32 0.0, %v596
        %v598 = vpop.f32.mrb[0].mxu0
        %v599 = vpop.f32.mrb[0].mxu0
        %v600 = vadd.f32 0.0, %v599
        %v601 = vpop.f32.mrb[0].mxu0
        %602 = vdwg.mxu0
        %v603 = vpack.c.bf16 %v480, %v477
        %v604 = vpack.c.bf16 %v488, %v485
        %v605 = vpack.c.bf16 %v496, %v493
        %v606 = vpack.c.bf16 %v504, %v501
        %v607 = vpack.c.bf16 %v512, %v509
        %v608 = vpack.c.bf16 %v520, %v517
        %v609 = vpack.c.bf16 %v528, %v525
        %v610 = vpack.c.bf16 %v536, %v533
        %v611 = vpack.c.bf16 %v544, %v541
        %v612 = vpack.c.bf16 %v552, %v549
        %v613 = vpack.c.bf16 %v560, %v557
        %v614 = vpack.c.bf16 %v568, %v565
        %v615 = vpack.c.bf16 %v576, %v573
        %v616 = vpack.c.bf16 %v584, %v581
        %v617 = vpack.c.bf16 %v592, %v589
        %v618 = vpack.c.bf16 %v600, %v597
        %v635 = vunpack.c.l.b16 %v603
        %v636 = vunpack.c.h.b16 %v603
        %v637 = vunpack.c.l.b16 %v604
        %v638 = vunpack.c.h.b16 %v604
        %v639 = vunpack.c.l.b16 %v605
        %v640 = vunpack.c.h.b16 %v605
        %v641 = vunpack.c.l.b16 %v606
        %v642 = vunpack.c.h.b16 %v606
        %v643 = vunpack.c.l.b16 %v607
        %v644 = vunpack.c.h.b16 %v607
        %v645 = vunpack.c.l.b16 %v608
        %v646 = vunpack.c.h.b16 %v608
        %v647 = vunpack.c.l.b16 %v609
        %v648 = vunpack.c.h.b16 %v609
        %v649 = vunpack.c.l.b16 %v610
        %v650 = vunpack.c.h.b16 %v610
        %v651 = vunpack.c.l.b16 %v611
        %v652 = vunpack.c.h.b16 %v611
        %v653 = vunpack.c.l.b16 %v612
        %v654 = vunpack.c.h.b16 %v612
        %v655 = vunpack.c.l.b16 %v613
        %v656 = vunpack.c.h.b16 %v613
        %v657 = vunpack.c.l.b16 %v614
        %v658 = vunpack.c.h.b16 %v614
        %v659 = vunpack.c.l.b16 %v615
        %v660 = vunpack.c.h.b16 %v615
        %v661 = vunpack.c.l.b16 %v616
        %v662 = vunpack.c.h.b16 %v616
        %v663 = vunpack.c.l.b16 %v617
        %v664 = vunpack.c.h.b16 %v617
        %v665 = vunpack.c.l.b16 %v618
        %v666 = vunpack.c.h.b16 %v618
        %v667 = vpack.c.b16 %v635, %v635
        %v668 = vpack.c.b16 %v636, %v636
        %v669 = vpack.c.b16 %v637, %v637
        %v670 = vpack.c.b16 %v638, %v638
        %v671 = vpack.c.b16 %v639, %v639
        %v672 = vpack.c.b16 %v640, %v640
        %v673 = vpack.c.b16 %v641, %v641
        %v674 = vpack.c.b16 %v642, %v642
        %v675 = vpack.c.b16 %v643, %v643
        %v676 = vpack.c.b16 %v644, %v644
        %v677 = vpack.c.b16 %v645, %v645
        %v678 = vpack.c.b16 %v646, %v646
        %v679 = vpack.c.b16 %v647, %v647
        %v680 = vpack.c.b16 %v648, %v648
        %v681 = vpack.c.b16 %v649, %v649
        %v682 = vpack.c.b16 %v650, %v650
        %v683 = vpack.c.b16 %v651, %v651
        %v684 = vpack.c.b16 %v652, %v652
        %v685 = vpack.c.b16 %v653, %v653
        %v686 = vpack.c.b16 %v654, %v654
        %v687 = vpack.c.b16 %v655, %v655
        %v688 = vpack.c.b16 %v656, %v656
        %v689 = vpack.c.b16 %v657, %v657
        %v690 = vpack.c.b16 %v658, %v658
        %v691 = vpack.c.b16 %v659, %v659
        %v692 = vpack.c.b16 %v660, %v660
        %v693 = vpack.c.b16 %v661, %v661
        %v694 = vpack.c.b16 %v662, %v662
        %v695 = vpack.c.b16 %v663, %v663
        %v696 = vpack.c.b16 %v664, %v664
        %v697 = vpack.c.b16 %v665, %v665
        %v698 = vpack.c.b16 %v666, %v666
        %731 = vst [vmem:[%s234] sm:$0xf] %v667
        %732 = vst [vmem:[%s234 + $0x4] sm:$0xf] %v668
        %733 = vst [vmem:[%s234 + $0x8] sm:$0xf] %v669
        %734 = vst [vmem:[%s234 + $0xc] sm:$0xf] %v670
        %735 = vst [vmem:[%s234 + $0x10] sm:$0xf] %v671
        %736 = vst [vmem:[%s234 + $0x14] sm:$0xf] %v672
        %737 = vst [vmem:[%s234 + $0x18] sm:$0xf] %v673
        %738 = vst [vmem:[%s234 + $0x1c] sm:$0xf] %v674
        %739 = vst [vmem:[%s234 + $0x20] sm:$0xf] %v675
        %740 = vst [vmem:[%s234 + $0x24] sm:$0xf] %v676
        %741 = vst [vmem:[%s234 + $0x28] sm:$0xf] %v677
        %742 = vst [vmem:[%s234 + $0x2c] sm:$0xf] %v678
        %743 = vst [vmem:[%s234 + $0x30] sm:$0xf] %v679
        %744 = vst [vmem:[%s234 + $0x34] sm:$0xf] %v680
        %745 = vst [vmem:[%s234 + $0x38] sm:$0xf] %v681
        %746 = vst [vmem:[%s234 + $0x3c] sm:$0xf] %v682
        %747 = vst [vmem:[%s234 + $0x40] sm:$0xf] %v683
        %748 = vst [vmem:[%s234 + $0x44] sm:$0xf] %v684
        %749 = vst [vmem:[%s234 + $0x48] sm:$0xf] %v685
        %750 = vst [vmem:[%s234 + $0x4c] sm:$0xf] %v686
        %751 = vst [vmem:[%s234 + $0x50] sm:$0xf] %v687
        %752 = vst [vmem:[%s234 + $0x54] sm:$0xf] %v688
        %753 = vst [vmem:[%s234 + $0x58] sm:$0xf] %v689
        %754 = vst [vmem:[%s234 + $0x5c] sm:$0xf] %v690
        %755 = vst [vmem:[%s234 + $0x60] sm:$0xf] %v691
        %756 = vst [vmem:[%s234 + $0x64] sm:$0xf] %v692
        %757 = vst [vmem:[%s234 + $0x68] sm:$0xf] %v693
        %758 = vst [vmem:[%s234 + $0x6c] sm:$0xf] %v694
        %759 = vst [vmem:[%s234 + $0x70] sm:$0xf] %v695
        %760 = vst [vmem:[%s234 + $0x74] sm:$0xf] %v696
        %761 = vst [vmem:[%s234 + $0x78] sm:$0xf] %v697
        %762 = vst [vmem:[%s234 + $0x7c] sm:$0xf] %v698
        %v763 = vadd.f32 %v477, %v480
        %v764 = vadd.f32 %v763, %v485
        %v765 = vadd.f32 %v764, %v488
        %v766 = vadd.f32 %v765, %v493
        %v767 = vadd.f32 %v766, %v496
        %v768 = vadd.f32 %v767, %v501
        %v769 = vadd.f32 %v768, %v504
        %v770 = vadd.f32 %v769, %v509
        %v771 = vadd.f32 %v770, %v512
        %v772 = vadd.f32 %v771, %v517
        %v773 = vadd.f32 %v772, %v520
        %v774 = vadd.f32 %v773, %v525
        %v775 = vadd.f32 %v774, %v528
        %v776 = vadd.f32 %v775, %v533
        %v777 = vadd.f32 %v776, %v536
        %v778 = vadd.f32 %v777, %v541
        %v779 = vadd.f32 %v778, %v544
        %v780 = vadd.f32 %v779, %v549
        %v781 = vadd.f32 %v780, %v552
        %v782 = vadd.f32 %v781, %v557
        %v783 = vadd.f32 %v782, %v560
        %v784 = vadd.f32 %v783, %v565
        %v785 = vadd.f32 %v784, %v568
        %v786 = vadd.f32 %v785, %v573
        %v787 = vadd.f32 %v786, %v576
        %v788 = vadd.f32 %v787, %v581
        %v789 = vadd.f32 %v788, %v584
        %v790 = vadd.f32 %v789, %v589
        %v791 = vadd.f32 %v790, %v592
        %v792 = vadd.f32 %v791, %v597
        %v793 = vadd.f32 %v792, %v600
        %v794 = vrot.slane %v793, 4
        %v795 = vadd.f32 %v793, %v794
        %v796 = vrot.slane %v795, 2
        %v797 = vadd.f32 %v795, %v796
        %v798 = vrot.slane %v797, 1
        %v799 = vadd.f32 %v797, %v798
        %800 = vst [vmem:[%s240] sm:$0x1] %v799
        %v801 = vmul.f32 %v477, %v477
        %v802 = vmul.f32 %v480, %v480
        %v803 = vmul.f32 %v485, %v485
        %v804 = vmul.f32 %v488, %v488
        %v805 = vmul.f32 %v493, %v493
        %v806 = vmul.f32 %v496, %v496
        %v807 = vmul.f32 %v501, %v501
        %v808 = vmul.f32 %v504, %v504
        %v809 = vmul.f32 %v509, %v509
        %v810 = vmul.f32 %v512, %v512
        %v811 = vmul.f32 %v517, %v517
        %v812 = vmul.f32 %v520, %v520
        %v813 = vmul.f32 %v525, %v525
        %v814 = vmul.f32 %v528, %v528
        %v815 = vmul.f32 %v533, %v533
        %v816 = vmul.f32 %v536, %v536
        %v817 = vmul.f32 %v541, %v541
        %v818 = vmul.f32 %v544, %v544
        %v819 = vmul.f32 %v549, %v549
        %v820 = vmul.f32 %v552, %v552
        %v821 = vmul.f32 %v557, %v557
        %v822 = vmul.f32 %v560, %v560
        %v823 = vmul.f32 %v565, %v565
        %v824 = vmul.f32 %v568, %v568
        %v825 = vmul.f32 %v573, %v573
        %v826 = vmul.f32 %v576, %v576
        %v827 = vmul.f32 %v581, %v581
        %v828 = vmul.f32 %v584, %v584
        %v829 = vmul.f32 %v589, %v589
        %v830 = vmul.f32 %v592, %v592
        %v831 = vmul.f32 %v597, %v597
        %v832 = vmul.f32 %v600, %v600
        %v833 = vadd.f32 %v801, %v802
        %v834 = vadd.f32 %v833, %v803
        %v835 = vadd.f32 %v834, %v804
        %v836 = vadd.f32 %v835, %v805
        %v837 = vadd.f32 %v836, %v806
        %v838 = vadd.f32 %v837, %v807
        %v839 = vadd.f32 %v838, %v808
        %v840 = vadd.f32 %v839, %v809
        %v841 = vadd.f32 %v840, %v810
        %v842 = vadd.f32 %v841, %v811
        %v843 = vadd.f32 %v842, %v812
        %v844 = vadd.f32 %v843, %v813
        %v845 = vadd.f32 %v844, %v814
        %v846 = vadd.f32 %v845, %v815
        %v847 = vadd.f32 %v846, %v816
        %v848 = vadd.f32 %v847, %v817
        %v849 = vadd.f32 %v848, %v818
        %v850 = vadd.f32 %v849, %v819
        %v851 = vadd.f32 %v850, %v820
        %v852 = vadd.f32 %v851, %v821
        %v853 = vadd.f32 %v852, %v822
        %v854 = vadd.f32 %v853, %v823
        %v855 = vadd.f32 %v854, %v824
        %v856 = vadd.f32 %v855, %v825
        %v857 = vadd.f32 %v856, %v826
        %v858 = vadd.f32 %v857, %v827
        %v859 = vadd.f32 %v858, %v828
        %v860 = vadd.f32 %v859, %v829
        %v861 = vadd.f32 %v860, %v830
        %v862 = vadd.f32 %v861, %v831
        %v863 = vadd.f32 %v862, %v832
        %v864 = vrot.slane %v863, 4
        %v865 = vadd.f32 %v863, %v864
        %v866 = vrot.slane %v865, 2
        %v867 = vadd.f32 %v865, %v866
        %v868 = vrot.slane %v867, 1
        %v869 = vadd.f32 %v867, %v868
        %870 = vst [vmem:[%s246] sm:$0x1] %v869
        %s871 = sand.u32 %s81, 1
        %s872 = scalar_lea.sflag [#allocation4], %s871
        %s873 = sand.u32 %s81, 1
        %s874 = smul.addr %s873, 128
        %s875 = scalar_lea.vmem [#allocation7], %s874
        %s876 = sand.u32 %s26, 1
        %s877 = scalar_lea.sflag [#allocation9], %s876
        %s878 = sand.u32 %s107, 1
        %s879 = scalar_lea.vmem [#allocation8], %s878
        %s880 = sand.u32 %s26, 1
        %s881 = scalar_lea.sflag [#allocation9], %s880
        %s882 = sand.u32 %s133, 1
        %s883 = scalar_lea.vmem [#allocation10], %s882
        // Predicated region
        $region37: #{tpu_custom_call.1} parent=27 // pred_check
          %p884 = pneg %p91
        $region38: #{tpu_custom_call.1} parent=27 // pred_check_branch
          %886 = sbr.rel (%p884) target = $region40
        $region39: #{tpu_custom_call.1} parent=27 // pred_region
          %s887 = smul.u32 32, %s26
          %s889 = ssub.s32 2048, 2048
          %890 = vsyncadd %s872, %s889
          %s891 = smul.addr %s887, 64
          %s892 = scalar_lea.hbm %s2, %s891
          %s893 = sshll.u32 %s875, 4
          %s894 = int_to_ptr.vmem [resolvable:$true] %s893
          %899 = dma.vmem_to_hbm [thread:$0]  %s894, 2048, %s892, %s872, 64, 64, 4
        $region40: #{tpu_custom_call.1} parent=27 // pred_fallthru
          _
        // Predicated region
        $region41: #{tpu_custom_call.1} parent=27 // pred_check
          %p900 = pneg %p117
        $region42: #{tpu_custom_call.1} parent=27 // pred_check_branch
          %902 = sbr.rel (%p900) target = $region44
        $region43: #{tpu_custom_call.1} parent=27 // pred_region
          %s904 = ssub.s32 16, 16
          %905 = vsyncadd %s877, %s904
          %s906 = smul.addr %s26, 16
          %s907 = scalar_lea.hbm %s3, %s906
          %s909 = sshll.u32 %s879, 4
          %s910 = int_to_ptr.vmem [resolvable:$true] %s909
          %912 = dma.vmem_to_hbm [thread:$0]  %s910, 16, %s907, %s877
        $region44: #{tpu_custom_call.1} parent=27 // pred_fallthru
          _
        // Predicated region
        $region45: #{tpu_custom_call.1} parent=27 // pred_check
          %p913 = pneg %p143
        $region46: #{tpu_custom_call.1} parent=27 // pred_check_branch
          %915 = sbr.rel (%p913) target = $region48
        $region47: #{tpu_custom_call.1} parent=27 // pred_region
          %s917 = ssub.s32 16, 16
          %918 = vsyncadd %s881, %s917
          %s919 = smul.addr %s26, 16
          %s920 = scalar_lea.hbm %s4, %s919
          %s922 = sshll.u32 %s883, 4
          %s923 = int_to_ptr.vmem [resolvable:$true] %s922
          %925 = dma.vmem_to_hbm [thread:$0]  %s923, 16, %s920, %s881
        $region48: #{tpu_custom_call.1} parent=27 // pred_fallthru
          _
      $region28: #{tpu_custom_call.1} parent=5 // pred_fallthru
        _
      %p926 = scmp.le.s32.totalorder 2, %s21
      // Predicated region
      $region49: #{tpu_custom_call.1} parent=5 // pred_check
        %p927 = pneg %p926
      $region50: #{tpu_custom_call.1} parent=5 // pred_check_branch
        %929 = sbr.rel (%p927) target = $region52
      $region51: #{tpu_custom_call.1} parent=5 // pred_region
        %s930 = ssub.s32 %s21, 2
        // Predicated region
        $region53: #{tpu_custom_call.1} parent=51 // pred_check
          %p931 = pneg %p97
        $region54: #{tpu_custom_call.1} parent=51 // pred_check_branch
          %933 = sbr.rel (%p931) target = $region56
        $region55: #{tpu_custom_call.1} parent=51 // pred_region
          %s934 = sand.u32 %s82, 1
          %s935 = scalar_lea.sflag [#allocation4], %s934
          %s936 = sand.u32 %s82, 1
          %s937 = smul.addr %s936, 128
          %s938 = scalar_lea.vmem [#allocation7], %s937
          %939 = dma.done %s935, 2048
        $region56: #{tpu_custom_call.1} parent=51 // pred_fallthru
          _
        // Predicated region
        $region57: #{tpu_custom_call.1} parent=51 // pred_check
          %p940 = pneg %p123
        $region58: #{tpu_custom_call.1} parent=51 // pred_check_branch
          %942 = sbr.rel (%p940) target = $region60
        $region59: #{tpu_custom_call.1} parent=51 // pred_region
          %s943 = sand.u32 %s27, 1
          %s944 = scalar_lea.sflag [#allocation9], %s943
          %s945 = sand.u32 %s108, 1
          %s946 = scalar_lea.vmem [#allocation8], %s945
          %947 = dma.done %s944, 16
        $region60: #{tpu_custom_call.1} parent=51 // pred_fallthru
          _
        // Predicated region
        $region61: #{tpu_custom_call.1} parent=51 // pred_check
          %p948 = pneg %p149
        $region62: #{tpu_custom_call.1} parent=51 // pred_check_branch
          %950 = sbr.rel (%p948) target = $region64
        $region63: #{tpu_custom_call.1} parent=51 // pred_region
          %s951 = sand.u32 %s27, 1
          %s952 = scalar_lea.sflag [#allocation9], %s951
          %s953 = sand.u32 %s134, 1
          %s954 = scalar_lea.vmem [#allocation10], %s953
          %955 = dma.done %s952, 16
        $region64: #{tpu_custom_call.1} parent=51 // pred_fallthru
          _
      $region52: #{tpu_custom_call.1} parent=5 // pred_fallthru
        _
    $region6: #{tpu_custom_call.1} parent=1 // loop_footer
      %s25 = sadd.s32 1, %s21
    $region7: #{tpu_custom_call.1} parent=1 // loop_footer_branch
      %20 = sbr.rel target = $region3
    $region8: #{tpu_custom_call.1} parent=1 // loop_exit
      _
    %956 = vsyncpa [#allocation3], 1
    %s957 = scalar_lea.sflag [#allocation3], 1
    %958 = vsyncpa %s957, 1
    %959 = vsyncpa [#allocation6], 1
    %960 = vsyncpa [#allocation4], 1
    %s961 = scalar_lea.sflag [#allocation4], 1
    %962 = vsyncpa %s961, 1
    %963 = vsyncpa [#allocation9], 1
    %s964 = scalar_lea.sflag [#allocation9], 1
    %965 = vsyncpa %s964, 1

</llo_original>
